<compile_context>
chip_gen: v7x
topology: tpu7x:2x2x1
jax: 0.10.0
libtpu: 0.0.40
codegen_flags: <defaults>
</compile_context>

<pallas_src>
import functools
from typing import NamedTuple

import jax
import jax.numpy as jnp
from jax.experimental import pallas as pl
from jax.experimental.pallas import tpu as pltpu


_NEG_LARGE = -1e30  # finite "minus infinity" for padded vocab columns


def _round_up(x: int, m: int) -> int:
    return ((x + m - 1) // m) * m


class MlmParams(NamedTuple):
    weight: jax.Array      # (D, V_pad) bf16
    bias: jax.Array        # (1, V_pad) f32 (padded cols = _NEG_LARGE)
    vocab_tile: int        # TV (multiple of 128, divides V_pad)
    vocab_size: int        # original V


def prepare_mlm_params(weight, bias, *, vocab_tile=None) -> MlmParams:
    """One-time prep: cast weight to bf16, pad vocab axis, reshape bias.

    Hoist this out of the per-step path (it reads/writes the full (D, V)
    weight in HBM) -- do it once when parameters are created/updated.
    """
    D, V = weight.shape
    if vocab_tile is None:
        # Smaller vocab tiles when D is large so double-buffered (D, TV) weight
        # blocks + f32 temporaries fit v7x's 64 MiB VMEM.
        vocab_tile = 1024 if D >= 2048 else 2048
    tv = _round_up(min(vocab_tile, _round_up(V, 128)), 128)
    v_pad = _round_up(_round_up(V, 128), tv)
    # Invariant: total vocab padding < tv, so the last vocab tile always has at
    # least one real column (keeps the online-softmax max finite & NaN-free).
    assert v_pad - V < tv

    w = jnp.asarray(weight, jnp.bfloat16)
    b = jnp.asarray(bias, jnp.float32)
    if v_pad != V:
        w = jnp.pad(w, ((0, 0), (0, v_pad - V)))
        b = jnp.pad(b, (0, v_pad - V), constant_values=_NEG_LARGE)
    return MlmParams(w, b.reshape(1, v_pad), tv, V)


def _mlm_kernel(x_ref, w_ref, b_ref, o_ref, m_ref, l_ref):
    # x_ref: (RT, D) bf16    w_ref: (D, TV) bf16    b_ref: (1, TV) f32
    # o_ref: (RT, TV) out_dtype
    # m_ref / l_ref: (n_row_tiles, RT, 1) f32 persistent online-softmax stats
    #   (m_ref holds the running max during pass 0 and the final logsumexp
    #    after the last vocab tile of pass 0).
    p = pl.program_id(0)           # 0 = statistics pass, 1 = emit pass
    j = pl.program_id(1)           # vocab tile
    i = pl.program_id(2)           # row tile
    n_vocab = pl.num_programs(1)

    # bf16 operands on the MXU, f32 accumulation; softmax math stays in f32.
    logits = jnp.dot(x_ref[...], w_ref[...], preferred_element_type=jnp.float32)
    logits = logits + b_ref[...]

    @pl.when(jnp.logical_and(p == 0, j == 0))
    def _init():
        m_ref[i] = jnp.full(m_ref.shape[1:], -jnp.inf, jnp.float32)
        l_ref[i] = jnp.zeros(l_ref.shape[1:], jnp.float32)

    @pl.when(p == 0)
    def _stats():
        m_prev = m_ref[i]
        m_new = jnp.maximum(m_prev, jnp.max(logits, axis=-1, keepdims=True))
        l_new = l_ref[i] * jnp.exp(m_prev - m_new) + jnp.sum(
            jnp.exp(logits - m_new), axis=-1, keepdims=True
        )
        l_ref[i] = l_new
        # On the last vocab tile fold logsumexp into m_ref so the emit pass
        # reads it directly (removes one log per row per vocab tile in pass 1).
        m_ref[i] = jnp.where(j == n_vocab - 1, m_new + jnp.log(l_new), m_new)

    @pl.when(p == 1)
    def _emit():
        o_ref[...] = (logits - m_ref[i]).astype(o_ref.dtype)


@functools.partial(
    jax.jit, static_argnames=("vocab_tile", "vocab_size", "row_tile", "out_dtype")
)
def _mlm_log_probs_2d(x2, w, b2, *, vocab_tile, vocab_size, row_tile, out_dtype):
    """x2: (rows, D) f32/bf16; w: (D, V_pad) bf16; b2: (1, V_pad) f32."""
    rows, D = x2.shape
    v_pad = w.shape[1]
    tv = vocab_tile

    rt = _round_up(min(row_tile, _round_up(rows, 16)), 16)
    rows_pad = _round_up(rows, rt)
    n_row_tiles = rows_pad // rt
    n_vocab_tiles = v_pad // tv

    xb = x2.astype(jnp.bfloat16)
    if rows_pad != rows:
        xb = jnp.pad(xb, ((0, rows_pad - rows), (0, 0)))

    # ---- generation-aware VMEM limit -------------------------------------
    out_itemsize = jnp.dtype(out_dtype).itemsize
    vmem_est = (
        2 * rt * D * 2                     # x blocks, double-buffered (bf16)
        + 2 * D * tv * 2                   # weight blocks (bf16)
        + 2 * 8 * tv * 4                   # bias blocks (sublane-padded)
        + 2 * rt * tv * out_itemsize       # output blocks
        + 2 * rows_pad * 512               # m/l scratch (lane-padded to 128)
        + 4 * rt * tv * 4                  # in-kernel f32 temporaries headroom
    )
    cap = 64 * 1024 * 1024
    try:
        cap = int(pltpu.get_tpu_info().vmem_capacity_bytes)
    except Exception:
        pass
    vmem_limit = int(min(max(vmem_est, 32 * 1024 * 1024), int(0.75 * cap)))

    grid = (2, n_vocab_tiles, n_row_tiles)   # (pass, vocab tiles, row tiles)

    out = pl.pallas_call(
        _mlm_kernel,
        out_shape=jax.ShapeDtypeStruct((rows_pad, v_pad), out_dtype),
        grid_spec=pltpu.PrefetchScalarGridSpec(
            num_scalar_prefetch=0,
            grid=grid,
            in_specs=[
                # activations: re-streamed per (pass, vocab tile) -- cheap,
                # rows << V in the regimes that matter.
                pl.BlockSpec((rt, D), lambda p, j, i: (i, 0)),
                # weight: block index depends only on the vocab axis, which is
                # outer relative to rows -> streamed once per pass.
                pl.BlockSpec((D, tv), lambda p, j, i: (0, j)),
                pl.BlockSpec((1, tv), lambda p, j, i: (0, j)),
            ],
            # pass 0: parked at (0, 0), never written (and never flushed,
            # because the first pass-1 step reuses the same block index);
            # pass 1: each output block written exactly once, lane-dense.
            out_specs=pl.BlockSpec((rt, tv), lambda p, j, i: (i * p, j * p)),
            scratch_shapes=[
                pltpu.VMEM((n_row_tiles, rt, 1), jnp.float32),  # running max / lse
                pltpu.VMEM((n_row_tiles, rt, 1), jnp.float32),  # running sum of exp
            ],
        ),
        compiler_params=pltpu.CompilerParams(
            # pass/vocab axes carry the scratch accumulators; the row axis also
            # touches the shared stats scratch across both passes, so keep it
            # "arbitrary" (measured parallel-vs-arbitrary delta is ~0 anyway).
            dimension_semantics=("arbitrary", "arbitrary", "arbitrary"),
            vmem_limit_bytes=vmem_limit,
        ),
    )(xb, w, b2)

    return out[:rows, :vocab_size]


def mlm_log_probs(x, params: MlmParams, *, row_tile=256,
                  out_dtype=jnp.float32, max_rows_per_call=8192):
    """x: (B, S, D) -> log-probs (B, S, V) in out_dtype (f32 default)."""
    B, S, D = x.shape
    rows = B * S
    x2 = x.reshape(rows, D)
    chunks = []
    for r0 in range(0, rows, max_rows_per_call):
        xc = x2[r0:min(r0 + max_rows_per_call, rows)]
        chunks.append(
            _mlm_log_probs_2d(
                xc, params.weight, params.bias,
                vocab_tile=params.vocab_tile, vocab_size=params.vocab_size,
                row_tile=row_tile, out_dtype=out_dtype,
            )
        )
    out = chunks[0] if len(chunks) == 1 else jnp.concatenate(chunks, axis=0)
    return out.reshape(B, S, params.vocab_size)


def masked_language_model(x, weight, bias, **kwargs):
    """Convenience wrapper matching the PyTorch module's forward.

    Note: prepare_mlm_params() re-casts/pads the weight; for repeated calls,
    prepare once and call mlm_log_probs() directly.
    """
    return mlm_log_probs(x, prepare_mlm_params(weight, bias), **kwargs)


if __name__ == "__main__":
    # Small shapes consistent with the module's forward:
    batch, seq, d_model, vocab_size = 2, 8, 32, 128

    key = jax.random.PRNGKey(0)
    kx, kw, kb = jax.random.split(key, 3)

    # Deterministic params (mimicking nn.Linear's uniform(-1/sqrt(d), 1/sqrt(d)))
    bound = 1.0 / (d_model ** 0.5)
    weight = jax.random.uniform(
        kw, (d_model, vocab_size), dtype=jnp.float32, minval=-bound, maxval=bound
    )
    bias = jax.random.uniform(
        kb, (vocab_size,), dtype=jnp.float32, minval=-bound, maxval=bound
    )
    x = jax.random.normal(kx, (batch, seq, d_model), dtype=jnp.float32)

    # Hoisted one-time parameter prep (bf16 cast + vocab padding).
    params = prepare_mlm_params(weight, bias)

    out = mlm_log_probs(x, params)
    out = jax.block_until_ready(out)

    # Reference with the same matmul numerics (bf16 operands, f32 accumulate).
    logits_ref = jnp.dot(
        x.astype(jnp.bfloat16).reshape(-1, d_model),
        weight.astype(jnp.bfloat16),
        preferred_element_type=jnp.float32,
    ) + bias
    ref = jax.nn.log_softmax(logits_ref, axis=-1).reshape(batch, seq, vocab_size)

    assert out.shape == (batch, seq, vocab_size)
    assert jnp.allclose(out, ref, atol=1e-4, rtol=1e-4), "mismatch vs bf16 reference"

    # Sanity vs full-f32 reference (looser: matmul operands are bf16 -- an
    # intentional, documented numerics deviation from the f32 PyTorch module).
    ref_f32 = jax.nn.log_softmax(x @ weight + bias, axis=-1)
    assert jnp.allclose(out, ref_f32, atol=5e-2, rtol=5e-2), "mismatch vs f32 reference"

    print("KERNEL_OK")
</pallas_src>

<mosaic_0001>
module attributes {stable_mosaic.version = 11 : i64} {
  func.func @_mlm_kernel(%arg0: i32, %arg1: i32, %arg2: i32, %arg3: memref<16x32xbf16, #tpu.memory_space<vmem>>, %arg4: memref<32x128xbf16, #tpu.memory_space<vmem>>, %arg5: memref<1x128xf32, #tpu.memory_space<vmem>>, %arg6: memref<16x128xf32, #tpu.memory_space<vmem>>, %arg7: memref<1x16x1xf32, #tpu.memory_space<vmem>>, %arg8: memref<1x16x1xf32, #tpu.memory_space<vmem>>) attributes {dimension_semantics = [#tpu.dimension_semantics<arbitrary>, #tpu.dimension_semantics<arbitrary>, #tpu.dimension_semantics<arbitrary>], iteration_bounds = array<i64: 2, 1, 1>, scalar_prefetch = 0 : i64, scratch_operands = 2 : i64, tpu.core_type = #tpu.core_type<tc>, window_params = [{transform_indices = @transform_0, window_bounds = array<i64: 16, 32>}, {transform_indices = @transform_1, window_bounds = array<i64: 32, 128>}, {transform_indices = @transform_2, window_bounds = array<i64: 1, 128>}, {transform_indices = @transform_3, window_bounds = array<i64: 16, 128>}]} {
    %c0 = arith.constant 0 : index
    %c0_0 = arith.constant 0 : index
    %0 = vector.load %arg3[%c0, %c0_0] : memref<16x32xbf16, #tpu.memory_space<vmem>>, vector<16x32xbf16>
    %c0_1 = arith.constant 0 : index
    %c0_2 = arith.constant 0 : index
    %1 = vector.load %arg4[%c0_1, %c0_2] : memref<32x128xbf16, #tpu.memory_space<vmem>>, vector<32x128xbf16>
    %cst = arith.constant dense<0.000000e+00> : vector<16x128xf32>
    %2 = tpu.matmul %0, %1, %cst {dimension_numbers = #tpu.dot_dimension_numbers<[1], [0], [0], [1], [0, 0, 1, 1], [], []>} : vector<16x32xbf16>, vector<32x128xbf16>, vector<16x128xf32> -> vector<16x128xf32>
    %c0_3 = arith.constant 0 : index
    %c0_4 = arith.constant 0 : index
    %3 = vector.load %arg5[%c0_3, %c0_4] : memref<1x128xf32, #tpu.memory_space<vmem>>, vector<1x128xf32>
    %4 = vector.broadcast %3 : vector<1x128xf32> to vector<16x128xf32>
    %5 = arith.addf %2, %4 : vector<16x128xf32>
    %c0_i32 = arith.constant 0 : i32
    %6 = arith.cmpi eq, %arg0, %c0_i32 : i32
    %c0_i32_5 = arith.constant 0 : i32
    %7 = arith.cmpi eq, %arg1, %c0_i32_5 : i32
    %8 = arith.andi %6, %7 : i1
    %9 = arith.extui %8 : i1 to i32
    %c0_i32_6 = arith.constant 0 : i32
    %10 = arith.cmpi ne, %9, %c0_i32_6 : i32
    scf.if %10 {
      %cst_10 = arith.constant 0xFF800000 : f32
      %17 = vector.broadcast %cst_10 : f32 to vector<16x1xf32>
      %18 = arith.index_cast %arg2 : i32 to index
      %c0_11 = arith.constant 0 : index
      %c0_12 = arith.constant 0 : index
      %19 = vector.load %arg7[%18, %c0_11, %c0_12] : memref<1x16x1xf32, #tpu.memory_space<vmem>>, vector<1x16x1xf32>
      %20 = vector.shape_cast %19 : vector<1x16x1xf32> to vector<16x1xf32>
      %21 = vector.shape_cast %17 : vector<16x1xf32> to vector<1x16x1xf32>
      tpu.vector_store %arg7[%18, %c0_11, %c0_12], %21 {strides = array<i32>} : memref<1x16x1xf32, #tpu.memory_space<vmem>>, vector<1x16x1xf32>,
      %cst_13 = arith.constant 0.000000e+00 : f32
      %22 = vector.broadcast %cst_13 : f32 to vector<16x1xf32>
      %23 = arith.index_cast %arg2 : i32 to index
      %c0_14 = arith.constant 0 : index
      %c0_15 = arith.constant 0 : index
      %24 = vector.load %arg8[%23, %c0_14, %c0_15] : memref<1x16x1xf32, #tpu.memory_space<vmem>>, vector<1x16x1xf32>
      %25 = vector.shape_cast %24 : vector<1x16x1xf32> to vector<16x1xf32>
      %26 = vector.shape_cast %22 : vector<16x1xf32> to vector<1x16x1xf32>
      tpu.vector_store %arg8[%23, %c0_14, %c0_15], %26 {strides = array<i32>} : memref<1x16x1xf32, #tpu.memory_space<vmem>>, vector<1x16x1xf32>,
    } else {
    }
    %c0_i32_7 = arith.constant 0 : i32
    %11 = arith.cmpi eq, %arg0, %c0_i32_7 : i32
    %12 = arith.extui %11 : i1 to i32
    %c0_i32_8 = arith.constant 0 : i32
    %13 = arith.cmpi ne, %12, %c0_i32_8 : i32
    scf.if %13 {
      %17 = arith.index_cast %arg2 : i32 to index
      %c0_10 = arith.constant 0 : index
      %c0_11 = arith.constant 0 : index
      %18 = vector.load %arg7[%17, %c0_10, %c0_11] : memref<1x16x1xf32, #tpu.memory_space<vmem>>, vector<1x16x1xf32>
      %19 = vector.shape_cast %18 : vector<1x16x1xf32> to vector<16x1xf32>
      %cst_12 = arith.constant dense<0xFF800000> : vector<16xf32>
      %20 = vector.multi_reduction <maximumf>, %5, %cst_12 [1] : vector<16x128xf32> to vector<16xf32>
      %21 = vector.shape_cast %20 : vector<16xf32> to vector<16x1xf32>
      %22 = arith.maximumf %19, %21 : vector<16x1xf32>
      %23 = arith.index_cast %arg2 : i32 to index
      %c0_13 = arith.constant 0 : index
      %c0_14 = arith.constant 0 : index
      %24 = vector.load %arg8[%23, %c0_13, %c0_14] : memref<1x16x1xf32, #tpu.memory_space<vmem>>, vector<1x16x1xf32>
      %25 = vector.shape_cast %24 : vector<1x16x1xf32> to vector<16x1xf32>
      %26 = arith.subf %19, %22 : vector<16x1xf32>
      %27 = math.exp %26 : vector<16x1xf32>
      %28 = arith.mulf %25, %27 : vector<16x1xf32>
      %29 = vector.broadcast %22 : vector<16x1xf32> to vector<16x128xf32>
      %30 = arith.subf %5, %29 : vector<16x128xf32>
      %31 = math.exp %30 : vector<16x128xf32>
      %cst_15 = arith.constant dense<0.000000e+00> : vector<16xf32>
      %32 = vector.multi_reduction <add>, %31, %cst_15 [1] : vector<16x128xf32> to vector<16xf32>
      %33 = vector.shape_cast %32 : vector<16xf32> to vector<16x1xf32>
      %34 = arith.addf %28, %33 : vector<16x1xf32>
      %35 = arith.index_cast %arg2 : i32 to index
      %c0_16 = arith.constant 0 : index
      %c0_17 = arith.constant 0 : index
      %36 = vector.load %arg8[%35, %c0_16, %c0_17] : memref<1x16x1xf32, #tpu.memory_space<vmem>>, vector<1x16x1xf32>
      %37 = vector.shape_cast %36 : vector<1x16x1xf32> to vector<16x1xf32>
      %38 = vector.shape_cast %34 : vector<16x1xf32> to vector<1x16x1xf32>
      tpu.vector_store %arg8[%35, %c0_16, %c0_17], %38 {strides = array<i32>} : memref<1x16x1xf32, #tpu.memory_space<vmem>>, vector<1x16x1xf32>,
      %c0_i32_18 = arith.constant 0 : i32
      %39 = arith.cmpi eq, %arg1, %c0_i32_18 : i32
      %40 = math.log %34 : vector<16x1xf32>
      %41 = arith.addf %22, %40 : vector<16x1xf32>
      %42 = arith.select %39, %41, %22 : vector<16x1xf32>
      %43 = arith.index_cast %arg2 : i32 to index
      %c0_19 = arith.constant 0 : index
      %c0_20 = arith.constant 0 : index
      %44 = vector.load %arg7[%43, %c0_19, %c0_20] : memref<1x16x1xf32, #tpu.memory_space<vmem>>, vector<1x16x1xf32>
      %45 = vector.shape_cast %44 : vector<1x16x1xf32> to vector<16x1xf32>
      %46 = vector.shape_cast %42 : vector<16x1xf32> to vector<1x16x1xf32>
      tpu.vector_store %arg7[%43, %c0_19, %c0_20], %46 {strides = array<i32>} : memref<1x16x1xf32, #tpu.memory_space<vmem>>, vector<1x16x1xf32>,
    } else {
    }
    %c1_i32 = arith.constant 1 : i32
    %14 = arith.cmpi eq, %arg0, %c1_i32 : i32
    %15 = arith.extui %14 : i1 to i32
    %c0_i32_9 = arith.constant 0 : i32
    %16 = arith.cmpi ne, %15, %c0_i32_9 : i32
    scf.if %16 {
      %17 = arith.index_cast %arg2 : i32 to index
      %c0_10 = arith.constant 0 : index
      %c0_11 = arith.constant 0 : index
      %18 = vector.load %arg7[%17, %c0_10, %c0_11] : memref<1x16x1xf32, #tpu.memory_space<vmem>>, vector<1x16x1xf32>
      %19 = vector.shape_cast %18 : vector<1x16x1xf32> to vector<16x1xf32>
      %20 = vector.broadcast %19 : vector<16x1xf32> to vector<16x128xf32>
      %21 = arith.subf %5, %20 : vector<16x128xf32>
      %c0_12 = arith.constant 0 : index
      %c0_13 = arith.constant 0 : index
      %22 = vector.load %arg6[%c0_12, %c0_13] : memref<16x128xf32, #tpu.memory_space<vmem>>, vector<16x128xf32>
      tpu.vector_store %arg6[%c0_12, %c0_13], %21 {strides = array<i32>} : memref<16x128xf32, #tpu.memory_space<vmem>>, vector<16x128xf32>,
    } else {
    }
    return
  }
  func.func @transform_0(%arg0: i32, %arg1: i32, %arg2: i32) -> (i32, i32) {
    %c0_i32 = arith.constant 0 : i32
    %c0_i32_0 = arith.constant 0 : i32
    return %arg2, %c0_i32 : i32, i32
  }
  func.func @transform_1(%arg0: i32, %arg1: i32, %arg2: i32) -> (i32, i32) {
    %c0_i32 = arith.constant 0 : i32
    %c0_i32_0 = arith.constant 0 : i32
    return %c0_i32, %arg1 : i32, i32
  }
  func.func @transform_2(%arg0: i32, %arg1: i32, %arg2: i32) -> (i32, i32) {
    %c0_i32 = arith.constant 0 : i32
    %c0_i32_0 = arith.constant 0 : i32
    return %c0_i32, %arg1 : i32, i32
  }
  func.func @transform_3(%arg0: i32, %arg1: i32, %arg2: i32) -> (i32, i32) {
    %0 = arith.muli %arg2, %arg0 : i32
    %1 = arith.muli %arg1, %arg0 : i32
    %c0_i32 = arith.constant 0 : i32
    return %0, %1 : i32, i32
  }
}

</mosaic_0001>

<llo_original>
// kernel: _mlm_log_probs_2d.1
$region0: #{_mlm_log_probs_2d.1}
  #allocation0 [shape = 'u32[]', space=smem, size = 0x4, offset = 0x4, fixed_abs, tag = 'smem constant byte address 0x4 - core index']
  #allocation1 [shape = 'u32[144,128]{1,0:T(1,128)}', space=vmem, size = 0x12000, scoped, tag = 'internal scratch']
  #allocation2 [shape = 'f32[1,16,1]{2,1,0:T(8,128)}', space=vmem, size = 0x2000, scoped, tag = 'scratch operand']
  #allocation3 [shape = 'f32[1,16,1]{2,1,0:T(8,128)}', space=vmem, size = 0x2000, scoped, tag = 'scratch operand']
  %s0 = inlined_call_operand.vmem [shape: bf16[16,32], index: 0, kind: input, shape index: {}]
  %s1 = inlined_call_operand.vmem [shape: bf16[32,128], index: 1, kind: input, shape index: {}]
  %s2 = inlined_call_operand.vmem [shape: f32[1,128], index: 2, kind: input, shape index: {}]
  %s3 = inlined_call_operand.hbm [shape: f32[16,128], index: 3, kind: output, shape index: {}]
  %s4 = sld [smem:[#allocation0]]
  $region57: #{_mlm_log_probs_2d.1} parent=0
    _
  %s6 = ssub.s32 1, %s4
  %s7 = scalar_select 0, %s6, %s4
  $region1: #{_mlm_log_probs_2d.1} parent=0
    #allocation4 [shape = 'u8[16384]{0}', space=vmem, size = 0x4000, scoped, tag = 'output window, operand 0']
    #allocation5 [shape = 's32[2]{0}', space=sflag, size = 0x8, scoped, tag = 'scoped memory for _mlm_log_probs_2d.1']
    %8 = vsyncpa [#allocation5], 0
    %s9 = scalar_lea.sflag [#allocation5], 1
    %10 = vsyncpa %s9, 0
    loop: start=0, step=1, limit=4
    $region2: #{_mlm_log_probs_2d.1} parent=1 // loop_pre_header
      _
    $region3: #{_mlm_log_probs_2d.1} parent=1 // loop_header
      %s12 = sphi 0, %s16
      %p13 = scmp.ge.s32.totalorder %s12, 4
      %s19 = sphi 0, %s38
      %s20 = sphi 0, %s34
      %s21 = sphi 0, %s30
      %s22 = sphi 0, %s19
      %s23 = sphi 0, %s20
      %s24 = sphi 0, %s21
      %s25 = sphi 0, %s22
      %s26 = sphi 0, %s23
      %s27 = sphi 0, %s24
      %s41 = sphi 0, %s43
      %s44 = sphi 0, %s41
      %s45 = sphi 0, %s44
      %s61 = sphi 0, %s45
      %s67 = sphi 0, %s69
      %s70 = sphi 0, %s67
      %s71 = sphi 0, %s70
      %s87 = sphi 0, %s71
      %s93 = sphi 0, %s95
      %s96 = sphi 0, %s93
      %s97 = sphi 0, %s96
      %s113 = sphi 0, %s97
      %s125 = sphi 0, %s127
      %s128 = sphi 0, %s125
      %s129 = sphi 0, %s128
      %s145 = sphi 0, %s129
    $region4: #{_mlm_log_probs_2d.1} parent=1 // loop_header_branch
      %15 = sbr.rel (%p13) target = $region8
    $region5: #{_mlm_log_probs_2d.1} parent=1 // loop_body
      %s17 = ssub.s32 %s12, 1
      %s18 = ssub.s32 %s12, 2
      %s28 = sadd.s32 1, %s21
      %p29 = scmp.ge.s32.totalorder %s28, 1
      %s30 = scalar_select %p29, 0, %s28
      %s31 = sadd.s32 1, %s20
      %s32 = scalar_select %p29, %s31, %s20
      %p33 = scmp.ge.s32.totalorder %s32, 1
      %s34 = scalar_select %p33, 0, %s32
      %s35 = sadd.s32 1, %s19
      %s36 = scalar_select %p33, %s35, %s19
      %p37 = scmp.ge.s32.totalorder %s36, 2
      %s38 = scalar_select %p37, 0, %s36
      %s39 = ssub.s32 %s21, %s30
      %p40 = scmp.eq.s32.totalorder %s39, 0
      %s42 = sadd.s32 %s41, 1
      %s43 = scalar_select %p40, %s41, %s42
      %p46 = pneg %p40
      %p47 = scmp.eq.s32.totalorder %s12, 1
      %p48 = por %p46, %p47
      %p49 = scmp.ne.s32.totalorder %s41, %s44
      %p50 = scmp.eq.s32.totalorder %s12, 0
      %p51 = por %p49, %p50
      %p52 = scmp.ne.s32.totalorder %s41, %s44
      %p53 = scmp.eq.s32.totalorder %s17, 1
      %p54 = por %p52, %p53
      %p55 = scmp.ne.s32.totalorder %s44, %s45
      %p56 = scmp.eq.s32.totalorder %s17, 0
      %p57 = por %p55, %p56
      %p58 = scmp.ne.s32.totalorder %s44, %s45
      %p59 = scmp.eq.s32.totalorder %s18, 1
      %p60 = por %p58, %p59
      %p62 = scmp.ne.s32.totalorder %s45, %s61
      %p63 = scmp.eq.s32.totalorder %s18, 0
      %p64 = por %p62, %p63
      %s65 = ssub.s32 %s20, %s34
      %p66 = scmp.eq.s32.totalorder %s65, 0
      %s68 = sadd.s32 %s67, 1
      %s69 = scalar_select %p66, %s67, %s68
      %p72 = pneg %p66
      %p73 = scmp.eq.s32.totalorder %s12, 1
      %p74 = por %p72, %p73
      %p75 = scmp.ne.s32.totalorder %s67, %s70
      %p76 = scmp.eq.s32.totalorder %s12, 0
      %p77 = por %p75, %p76
      %p78 = scmp.ne.s32.totalorder %s67, %s70
      %p79 = scmp.eq.s32.totalorder %s17, 1
      %p80 = por %p78, %p79
      %p81 = scmp.ne.s32.totalorder %s70, %s71
      %p82 = scmp.eq.s32.totalorder %s17, 0
      %p83 = por %p81, %p82
      %p84 = scmp.ne.s32.totalorder %s70, %s71
      %p85 = scmp.eq.s32.totalorder %s18, 1
      %p86 = por %p84, %p85
      %p88 = scmp.ne.s32.totalorder %s71, %s87
      %p89 = scmp.eq.s32.totalorder %s18, 0
      %p90 = por %p88, %p89
      %s91 = ssub.s32 %s20, %s34
      %p92 = scmp.eq.s32.totalorder %s91, 0
      %s94 = sadd.s32 %s93, 1
      %s95 = scalar_select %p92, %s93, %s94
      %p98 = pneg %p92
      %p99 = scmp.eq.s32.totalorder %s12, 1
      %p100 = por %p98, %p99
      %p101 = scmp.ne.s32.totalorder %s93, %s96
      %p102 = scmp.eq.s32.totalorder %s12, 0
      %p103 = por %p101, %p102
      %p104 = scmp.ne.s32.totalorder %s93, %s96
      %p105 = scmp.eq.s32.totalorder %s17, 1
      %p106 = por %p104, %p105
      %p107 = scmp.ne.s32.totalorder %s96, %s97
      %p108 = scmp.eq.s32.totalorder %s17, 0
      %p109 = por %p107, %p108
      %p110 = scmp.ne.s32.totalorder %s96, %s97
      %p111 = scmp.eq.s32.totalorder %s18, 1
      %p112 = por %p110, %p111
      %p114 = scmp.ne.s32.totalorder %s97, %s113
      %p115 = scmp.eq.s32.totalorder %s18, 0
      %p116 = por %p114, %p115
      %s117 = smul.u32 %s21, %s19
      %s118 = smul.u32 %s20, %s19
      %s119 = smul.u32 %s30, %s38
      %s120 = smul.u32 %s34, %s38
      %s121 = ssub.s32 %s117, %s119
      %s122 = ssub.s32 %s118, %s120
      %s123 = sor.u32 %s121, %s122
      %p124 = scmp.eq.s32.totalorder %s123, 0
      %s126 = sadd.s32 %s125, 1
      %s127 = scalar_select %p124, %s125, %s126
      %p130 = pneg %p124
      %p131 = scmp.eq.s32.totalorder %s12, 1
      %p132 = por %p130, %p131
      %p133 = scmp.ne.s32.totalorder %s125, %s128
      %p134 = scmp.eq.s32.totalorder %s12, 0
      %p135 = por %p133, %p134
      %p136 = scmp.ne.s32.totalorder %s125, %s128
      %p137 = scmp.eq.s32.totalorder %s17, 1
      %p138 = por %p136, %p137
      %p139 = scmp.ne.s32.totalorder %s128, %s129
      %p140 = scmp.eq.s32.totalorder %s17, 0
      %p141 = por %p139, %p140
      %p142 = scmp.ne.s32.totalorder %s128, %s129
      %p143 = scmp.eq.s32.totalorder %s18, 1
      %p144 = por %p142, %p143
      %p146 = scmp.ne.s32.totalorder %s129, %s145
      %p147 = scmp.eq.s32.totalorder %s18, 0
      %p148 = por %p146, %p147
      %p149 = scmp.le.s32.totalorder 1, %s12
      %p150 = scmp.lt.s32.totalorder %s12, 3
      %p151 = pnand %p149, %p150
      %p152 = pneg %p151
      // Predicated region
      $region9: #{_mlm_log_probs_2d.1} parent=5 // pred_check
        _
      $region10: #{_mlm_log_probs_2d.1} parent=5 // pred_check_branch
        %154 = sbr.rel (%p151) target = $region12
      $region11: #{_mlm_log_probs_2d.1} parent=5 // pred_region
        %s155 = ssub.s32 %s12, 1
        // Predicated region
        $region13: #{_mlm_log_probs_2d.1} parent=11 // pred_check
          %p156 = pneg %p57
        $region14: #{_mlm_log_probs_2d.1} parent=11 // pred_check_branch
          %158 = sbr.rel (%p156) target = $region16
        $region15: #{_mlm_log_probs_2d.1} parent=11 // pred_region
          %s159 = smul.u32 2, %s24
          %p160 = scmp.lt.s32.totalorder %s159, 1
          %s161 = scalar_select %p160, %s159, 1
          %s162 = smul.addr %s161, 4
          %s163 = scalar_lea.vmem %s0, %s162
          %s164 = smul.u32 2, %s24
        $region16: #{_mlm_log_probs_2d.1} parent=11 // pred_fallthru
          _
        // Predicated region
        $region17: #{_mlm_log_probs_2d.1} parent=11 // pred_check
          %p165 = pneg %p83
        $region18: #{_mlm_log_probs_2d.1} parent=11 // pred_check_branch
          %167 = sbr.rel (%p165) target = $region20
        $region19: #{_mlm_log_probs_2d.1} parent=11 // pred_region
          %p168 = scmp.lt.s32.totalorder %s23, 0
          %s169 = scalar_select %p168, %s23, 0
          %s170 = smul.addr %s169, 4
          %s171 = scalar_lea.vmem %s1, %s170
        $region20: #{_mlm_log_probs_2d.1} parent=11 // pred_fallthru
          _
        // Predicated region
        $region21: #{_mlm_log_probs_2d.1} parent=11 // pred_check
          %p172 = pneg %p109
        $region22: #{_mlm_log_probs_2d.1} parent=11 // pred_check_branch
          %174 = sbr.rel (%p172) target = $region24
        $region23: #{_mlm_log_probs_2d.1} parent=11 // pred_region
          %p175 = scmp.lt.s32.totalorder %s23, 0
          %s176 = scalar_select %p175, %s23, 0
          %s177 = scalar_lea.vmem %s2, %s176
        $region24: #{_mlm_log_probs_2d.1} parent=11 // pred_fallthru
          _
      $region12: #{_mlm_log_probs_2d.1} parent=5 // pred_fallthru
        _
      %p178 = scmp.lt.s32.totalorder %s12, 2
      // Predicated region
      $region25: #{_mlm_log_probs_2d.1} parent=5 // pred_check
        %p179 = pneg %p178
      $region26: #{_mlm_log_probs_2d.1} parent=5 // pred_check_branch
        %181 = sbr.rel (%p179) target = $region28
      $region27: #{_mlm_log_probs_2d.1} parent=5 // pred_region
        _
      $region28: #{_mlm_log_probs_2d.1} parent=5 // pred_fallthru
        _
      %p182 = scmp.le.s32.totalorder 1, %s12
      %p183 = scmp.lt.s32.totalorder %s12, 3
      %p184 = pnand %p182, %p183
      %p185 = pneg %p184
      // Predicated region
      $region29: #{_mlm_log_probs_2d.1} parent=5 // pred_check
        _
      $region30: #{_mlm_log_probs_2d.1} parent=5 // pred_check_branch
        %187 = sbr.rel (%p184) target = $region32
      $region31: #{_mlm_log_probs_2d.1} parent=5 // pred_region
        %s188 = ssub.s32 %s12, 1
        %s189 = smul.u32 2, %s24
        %p190 = scmp.lt.s32.totalorder %s189, 1
        %s191 = scalar_select %p190, %s189, 1
        %s192 = smul.addr %s191, 4
        %s193 = scalar_lea.vmem %s0, %s192
        %p194 = pneg %p57
        %p195 = pneg %p54
        %p196 = scmp.lt.s32.totalorder %s23, 0
        %s197 = scalar_select %p196, %s23, 0
        %s198 = smul.addr %s197, 4
        %s199 = scalar_lea.vmem %s1, %s198
        %p200 = pneg %p83
        %p201 = pneg %p80
        %p202 = scmp.lt.s32.totalorder %s23, 0
        %s203 = scalar_select %p202, %s23, 0
        %s204 = scalar_lea.vmem %s2, %s203
        %p205 = pneg %p109
        %p206 = pneg %p106
        %p207 = pneg %p141
        %p208 = pneg %p138
        %s209 = sand.u32 %s128, 1
        %s210 = scalar_lea.sflag [#allocation5], %s209
        %s211 = sand.u32 %s128, 1
        %s212 = smul.addr %s211, 16
        %s213 = scalar_lea.vmem [#allocation4], %s212
        %s214 = smul.u32 2, %s24
        %p215 = scmp.lt.s32.totalorder %s214, 1
        %s216 = scalar_select %p215, %s214, 1
        %s217 = smul.addr %s216, 4
        %s218 = scalar_lea.vmem %s0, %s217
        %s219 = smul.u32 2, %s24
        %p220 = scmp.lt.s32.totalorder %s23, 0
        %s221 = scalar_select %p220, %s23, 0
        %s222 = smul.addr %s221, 4
        %s223 = scalar_lea.vmem %s1, %s222
        %p224 = scmp.lt.s32.totalorder %s23, 0
        %s225 = scalar_select %p224, %s23, 0
        %s226 = scalar_lea.vmem %s2, %s225
        %s227 = smul.u32 %s24, %s22
        %s228 = smul.u32 %s23, %s22
        %s229 = smul.u32 2, %s227
        %v231 = vld [vmem:[%s218] sm:$0xf]
        %v232 = vld [vmem:[%s218 + $0x4] sm:$0xf]
        %v233 = vld [vmem:[%s223] sm:$0xf]
        %v234 = vld [vmem:[%s223 + $0x4] sm:$0xf]
        %v235 = vld [vmem:[%s223 + $0x8] sm:$0xf]
        %v236 = vld [vmem:[%s223 + $0xc] sm:$0xf]
        %v237 = vld [vmem:[%s226] sm:$0x1]
        %v239 = vlaneseq
        %v240 = vshrl.u32 %v239, 7
        %v241 = vsub.s32 0, %v240
        %v242 = vrot.slane %v237, %v241
        %v246 = vunpack.c.l.b16 %v231
        %v247 = vunpack.c.l.b16 %v232
        %v248 = vpack.c.b16 %v247, %v246
        %v253 = vunpack.c.l.b16 %v233
        %v254 = vunpack.c.l.b16 %v234
        %v255 = vunpack.c.l.b16 %v235
        %v256 = vunpack.c.l.b16 %v236
        %v257 = vpack.c.b16 %v254, %v253
        %v258 = vpack.c.b16 %v256, %v255
        %vm261 = vcmask 261120
        %v263 = vsel %vm261, %v248, 0
        %265 = vmatprep.subr.bf16.mxu0 0
        %266 = vmatpush1.bf16.msra.mxu0 %v257
        %267 = vmatprep.subr.bf16.mxu0 0
        %268 = vmatpush1.bf16.msra.mxu0 %v258
        %269 = vmatprep.subr.bf16.mxu0 0
        %270 = vmatpush1.bf16.msra.mxu0 0
        %271 = vmatprep.subr.bf16.mxu0 0
        %272 = vmatpush1.bf16.msra.mxu0 0
        %273 = vmatprep.subr.bf16.mxu0 0
        %274 = vmatpush1.bf16.msra.mxu0 0
        %275 = vmatprep.subr.bf16.mxu0 0
        %276 = vmatpush1.bf16.msra.mxu0 0
        %277 = vmatprep.subr.bf16.mxu0 0
        %278 = vmatpush1.bf16.msra.mxu0 0
        %279 = vmatprep.subr.bf16.mxu0 0
        %280 = vmatpush1.bf16.msra.mxu0 0
        %281 = vmatprep.subr.bf16.mxu0 0
        %282 = vmatpush1.bf16.msra.mxu0 0
        %283 = vmatprep.subr.bf16.mxu0 0
        %284 = vmatpush1.bf16.msra.mxu0 0
        %285 = vmatprep.subr.bf16.mxu0 0
        %286 = vmatpush1.bf16.msra.mxu0 0
        %287 = vmatprep.subr.bf16.mxu0 0
        %288 = vmatpush1.bf16.msra.mxu0 0
        %289 = vmatprep.subr.bf16.mxu0 0
        %290 = vmatpush1.bf16.msra.mxu0 0
        %291 = vmatprep.subr.bf16.mxu0 0
        %292 = vmatpush1.bf16.msra.mxu0 0
        %293 = vmatprep.subr.bf16.mxu0 0
        %294 = vmatpush1.bf16.msra.mxu0 0
        %295 = vmatprep.subr.bf16.mxu0 0
        %296 = vmatpush1.bf16.msra.mxu0 0
        %297 = vmatprep.mubr.bf16.mxu0 0
        %298 = vmatmul.mubr.bf16.gmra.mrb[0].mxu0 %v263
        %v299 = vpop.f32.mrb[0].mxu0
        %v300 = vadd.f32 %v242, %v299
        %v301 = vpop.f32.mrb[0].mxu0
        %v302 = vpop.f32.mrb[0].mxu0
        %v303 = vadd.f32 %v242, %v302
        %v304 = vpop.f32.mrb[0].mxu0
        %305 = vdwg.mxu0
        %p306 = scmp.eq.s32.totalorder %s22, 0
        %p307 = scmp.eq.s32.totalorder %s23, 0
        %p308 = pnand %p306, %p307
        %p309 = pneg %p308
        // Predicated region
        $region33: #{_mlm_log_probs_2d.1} parent=31 // pred_check
          _
        $region34: #{_mlm_log_probs_2d.1} parent=31 // pred_check_branch
          %311 = sbr.rel (%p308) target = $region36
        $region35: #{_mlm_log_probs_2d.1} parent=31 // pred_region
          %s312 = smul.u32 %s24, 16
          %s313 = scalar_lea.vmem [#allocation2], %s312
          %vm314 = vcmask 7168
          %315 = vst.msk [vmem:[%s313] sm:$0xff] %vm314, -inf
          %316 = vst.msk [vmem:[%s313 + $0x8] sm:$0xff] %vm314, -inf
          %s317 = scalar_lea.vmem [#allocation3], %s312
          %318 = vst.msk [vmem:[%s317] sm:$0xff] %vm314, 0.0
          %319 = vst.msk [vmem:[%s317 + $0x8] sm:$0xff] %vm314, 0.0
        $region36: #{_mlm_log_probs_2d.1} parent=31 // pred_fallthru
          _
        // Predicated region
        $region37: #{_mlm_log_probs_2d.1} parent=31 // pred_check
          %p320 = pneg %p306
        $region38: #{_mlm_log_probs_2d.1} parent=31 // pred_check_branch
          %322 = sbr.rel (%p320) target = $region40
        $region39: #{_mlm_log_probs_2d.1} parent=31 // pred_region
          %s323 = smul.u32 %s24, 16
          %s324 = scalar_lea.vmem [#allocation2], %s323
          %v325 = vld [vmem:[%s324] sm:$0xff]
          %v326 = vld [vmem:[%s324 + $0x8] sm:$0xff]
          %327 = vmax.xlane.f32.xlu0 %v300
          %v328 = vpop.xlane.xlu0 %327
          %329 = vmax.xlane.f32.xlu0 %v303
          %v330 = vpop.xlane.xlu0 %329
          %v331 = vmax.f32 %v325, %v328
          %v332 = vmax.f32 %v326, %v330
          %s333 = scalar_lea.vmem [#allocation3], %s323
          %v334 = vld [vmem:[%s333] sm:$0xff]
          %v335 = vld [vmem:[%s333 + $0x8] sm:$0xff]
          %v336 = vsub.f32 %v325, %v331
          %v337 = vsub.f32 %v326, %v332
          %v338 = vmul.f32 %v336, 1.442695
          %v339 = vpow.pop %v338
          %v340 = vmul.f32 %v337, 1.442695
          %v341 = vpow.pop %v340
          %v342 = vmul.f32 %v334, %v339
          %v343 = vmul.f32 %v335, %v341
          %345 = vset.pattern.permute.xlu0 0
          %346 = vperm.xlu0 %345, %v331
          %v347 = vpop.permute.xlu0 %346
          %350 = vset.pattern.permute.xlu0 0
          %351 = vperm.xlu0 %350, %v332
          %v352 = vpop.permute.xlu0 %351
          %v354 = vsub.f32 %v300, %v347
          %v355 = vsub.f32 %v303, %v352
          %v356 = vmul.f32 %v354, 1.442695
          %v357 = vpow.pop %v356
          %v358 = vmul.f32 %v355, 1.442695
          %v359 = vpow.pop %v358
          %360 = vadd.xlane.f32.xlu0 %v357
          %v361 = vpop.xlane.xlu0 %360
          %362 = vadd.xlane.f32.xlu0 %v359
          %v363 = vpop.xlane.xlu0 %362
          %v364 = vadd.f32 %v342, %v361
          %v365 = vadd.f32 %v343, %v363
          %vm366 = vcmask 7168
          %367 = vst.msk [vmem:[%s333] sm:$0xff] %vm366, %v364
          %368 = vst.msk [vmem:[%s333 + $0x8] sm:$0xff] %vm366, %v365
          %v369 = vlog2.pop %v364
          %v370 = vmul.f32 %v369, 0.6931472
          %v371 = vlog2.pop %v365
          %v372 = vmul.f32 %v371, 0.6931472
          %v373 = vadd.f32 %v331, %v370
          %v374 = vadd.f32 %v332, %v372
          %s375 = scalar_select %p307, 1, 0
          %v376 = vstv %s375
          %vm377 = vcmp.eq.s32.totalorder %v376, 1
          %v378 = vsel %vm377, %v373, %v331
          %v379 = vsel %vm377, %v374, %v332
          %380 = vst.msk [vmem:[%s324] sm:$0xff] %vm366, %v378
          %381 = vst.msk [vmem:[%s324 + $0x8] sm:$0xff] %vm366, %v379
        $region40: #{_mlm_log_probs_2d.1} parent=31 // pred_fallthru
          _
        %p382 = scmp.eq.s32.totalorder %s22, 1
        // Predicated region
        $region41: #{_mlm_log_probs_2d.1} parent=31 // pred_check
          %p383 = pneg %p382
        $region42: #{_mlm_log_probs_2d.1} parent=31 // pred_check_branch
          %385 = sbr.rel (%p383) target = $region44
        $region43: #{_mlm_log_probs_2d.1} parent=31 // pred_region
          %s386 = smul.u32 %s24, 16
          %s387 = scalar_lea.vmem [#allocation2], %s386
          %v388 = vld [vmem:[%s387] sm:$0xff]
          %v389 = vld [vmem:[%s387 + $0x8] sm:$0xff]
          %391 = vset.pattern.permute.xlu0 0
          %392 = vperm.xlu0 %391, %v388
          %v393 = vpop.permute.xlu0 %392
          %396 = vset.pattern.permute.xlu0 0
          %397 = vperm.xlu0 %396, %v389
          %v398 = vpop.permute.xlu0 %397
          %v400 = vsub.f32 %v300, %v393
          %v401 = vsub.f32 %v303, %v398
          %402 = vst [vmem:[%s213] sm:$0xff] %v400
          %403 = vst [vmem:[%s213 + $0x8] sm:$0xff] %v401
        $region44: #{_mlm_log_probs_2d.1} parent=31 // pred_fallthru
          _
        %s404 = sand.u32 %s128, 1
        %s405 = scalar_lea.sflag [#allocation5], %s404
        %s406 = sand.u32 %s128, 1
        %s407 = smul.addr %s406, 16
        %s408 = scalar_lea.vmem [#allocation4], %s407
        // Predicated region
        $region45: #{_mlm_log_probs_2d.1} parent=31 // pred_check
          %p409 = pneg %p138
        $region46: #{_mlm_log_probs_2d.1} parent=31 // pred_check_branch
          %411 = sbr.rel (%p409) target = $region48
        $region47: #{_mlm_log_probs_2d.1} parent=31 // pred_region
          %s412 = smul.u32 %s24, %s22
          %s413 = smul.u32 %s23, %s22
          %s414 = smul.u32 2, %s412
          %s416 = ssub.s32 256, 256
          %417 = vsyncadd %s405, %s416
          %s418 = sadd.s32 %s413, %s414
          %s419 = smul.addr %s418, 128
          %s420 = scalar_lea.hbm %s3, %s419
          %s421 = sshll.u32 %s408, 4
          %s422 = int_to_ptr.vmem [resolvable:$true] %s421
          %427 = dma.vmem_to_hbm [thread:$0]  %s422, 256, %s420, %s405, 128, 128, 8
        $region48: #{_mlm_log_probs_2d.1} parent=31 // pred_fallthru
          _
      $region32: #{_mlm_log_probs_2d.1} parent=5 // pred_fallthru
        _
      %p428 = scmp.le.s32.totalorder 2, %s12
      // Predicated region
      $region49: #{_mlm_log_probs_2d.1} parent=5 // pred_check
        %p429 = pneg %p428
      $region50: #{_mlm_log_probs_2d.1} parent=5 // pred_check_branch
        %431 = sbr.rel (%p429) target = $region52
      $region51: #{_mlm_log_probs_2d.1} parent=5 // pred_region
        %s432 = ssub.s32 %s12, 2
        // Predicated region
        $region53: #{_mlm_log_probs_2d.1} parent=51 // pred_check
          %p433 = pneg %p144
        $region54: #{_mlm_log_probs_2d.1} parent=51 // pred_check_branch
          %435 = sbr.rel (%p433) target = $region56
        $region55: #{_mlm_log_probs_2d.1} parent=51 // pred_region
          %s436 = sand.u32 %s129, 1
          %s437 = scalar_lea.sflag [#allocation5], %s436
          %s438 = sand.u32 %s129, 1
          %s439 = smul.addr %s438, 16
          %s440 = scalar_lea.vmem [#allocation4], %s439
          %441 = dma.done %s437, 256
        $region56: #{_mlm_log_probs_2d.1} parent=51 // pred_fallthru
          _
      $region52: #{_mlm_log_probs_2d.1} parent=5 // pred_fallthru
        _
    $region6: #{_mlm_log_probs_2d.1} parent=1 // loop_footer
      %s16 = sadd.s32 1, %s12
    $region7: #{_mlm_log_probs_2d.1} parent=1 // loop_footer_branch
      %11 = sbr.rel target = $region3
    $region8: #{_mlm_log_probs_2d.1} parent=1 // loop_exit
      _
    %442 = vsyncpa [#allocation5], 1
    %s443 = scalar_lea.sflag [#allocation5], 1
    %444 = vsyncpa %s443, 1

</llo_original>
